<compile_context>
chip_gen: v7x
topology: tpu7x:2x2x1
jax: 0.10.0
libtpu: 0.0.40
codegen_flags: <defaults>
</compile_context>

<pallas_src>
import jax
import jax.numpy as jnp
from jax.experimental import pallas as pl
from jax.experimental.pallas import tpu as pltpu


def _round_up(x, m):
    return ((x + m - 1) // m) * m


# ----------------------------------------------------------------------------- kernel
def fcca_ar_kernel(x_ref, w_in_ref, b_in_ref, w_h_ref, b_h_ref,
                   w_heads_ref, b_heads_ref, out_ref):
    """One batch tile, batch on the lane axis.

    x_ref      : [D,  TB]  (compute dtype)
    w_in_ref   : [H0, D ]  (compute dtype),  b_in_ref   : [H0, 1] f32
    w_h_ref    : [H1, H0]  (compute dtype),  b_h_ref    : [H1, 1] f32
    w_heads_ref: [A,  H1]  f32 (chain folded), b_heads_ref: [A, 1] f32
    out_ref    : [A,  TB]  f32  (lane-dense store)
    """
    wdt = w_in_ref.dtype  # compute dtype of the two big matmuls (bf16 by default)

    # Layer 1: [H0, D] @ [D, TB] -> [H0, TB], f32 accumulation.
    # TODO(synk): K=D is tiny; a VPU broadcast-FMA path for this layer could free
    # MXU row-pass cycles -- only worth committing after bundle-count verification.
    h = jnp.dot(w_in_ref[...], x_ref[...], preferred_element_type=jnp.float32)
    h = jnp.maximum(h + b_in_ref[...], 0.0).astype(wdt)      # fused ReLU + downcast

    # Layer 2: [H1, H0] @ [H0, TB] -> [H1, TB], f32 accumulation.
    h = jnp.dot(w_h_ref[...], h, preferred_element_type=jnp.float32)
    h = jnp.maximum(h + b_h_ref[...], 0.0)                   # stays f32 for the f32 heads matmul

    # Heads (autoregressive chain pre-folded, kept in f32): [A, H1] @ [H1, TB] -> [A, TB].
    out = jnp.dot(w_heads_ref[...], h, preferred_element_type=jnp.float32) + b_heads_ref[...]
    out_ref[...] = out.astype(out_ref.dtype)                  # single lane-dense store


# ----------------------------------------------------------------------------- wrapper
def fold_params(params, compute_dtype=jnp.bfloat16):
    """Fold the per-head prev-logit coefficients into the heads matmul and
    return weights in the transposed (batch-on-lanes) layout the kernel expects.

    logits = proj @ M with proj = h @ w_heads + b_heads and
      M[:, 0] = e_0,  M[:, i] = e_i + w_prev[i] * M[:, i-1]
    so we pass (w_heads @ M)^T and (b_heads @ M)^T to the kernel.

    w_in / w_h are cast to `compute_dtype` (bf16 default); biases and the folded
    heads weights stay f32 (the chain fold can amplify values; the [A,H1] matmul
    is tiny so f32 costs nothing).
    """
    w_in, b_in, w_h, b_h, w_heads, b_heads, w_prev = params
    A = w_heads.shape[1]
    wp = w_prev[0].astype(jnp.float32)                         # [A]; wp[0] == 0
    cols = [jnp.zeros((A,), jnp.float32).at[0].set(1.0)]
    for i in range(1, A):                                      # A is small & static
        e_i = jnp.zeros((A,), jnp.float32).at[i].set(1.0)
        cols.append(e_i + wp[i] * cols[-1])
    M = jnp.stack(cols, axis=1)                                # [A, A] unit upper-triangular
    w_heads_f = w_heads.astype(jnp.float32) @ M                # [H1, A]
    b_heads_f = b_heads.astype(jnp.float32) @ M                # [1, A]
    return (w_in.T.astype(compute_dtype),                      # [H0, D]
            b_in.T.astype(jnp.float32),                        # [H0, 1]
            w_h.T.astype(compute_dtype),                       # [H1, H0]
            b_h.T.astype(jnp.float32),                         # [H1, 1]
            w_heads_f.T.astype(jnp.float32),                   # [A, H1]  (kept f32)
            b_heads_f.T.astype(jnp.float32))                   # [A, 1]


def fcca_ar_forward(states, folded_params, *, block_b=2048):
    """Batch-tiled forward pass.  `folded_params` comes from fold_params().

    Returns logits with the module's [B, A] convention.
    """
    w_in_t, b_in_t, w_h_t, b_h_t, w_heads_t, b_heads_t = folded_params
    B, D = states.shape
    H0 = w_in_t.shape[0]
    H1 = w_h_t.shape[0]
    A = w_heads_t.shape[0]

    ALIGN = 256  # multiple of 256 (v6e/v7x MXU) and of 128 (v5e lanes)
    # Aim for >= 2 grid steps (v7x has 2 TensorCores sharing the parallel axis),
    # never exceed block_b, always 256-aligned.
    tb = min(_round_up(block_b, ALIGN),
             max(ALIGN, _round_up((B + 1) // 2, ALIGN)))
    b_pad = _round_up(B, tb)
    grid = (b_pad // tb,)

    # Lane-dense input: [D, B_pad], zero-padded on the batch axis (no garbage rows).
    x_t = states.T.astype(w_in_t.dtype)
    if b_pad != B:
        x_t = jnp.pad(x_t, ((0, 0), (0, b_pad - B)))

    def resident(shape):  # weights/biases: constant index map -> stay in VMEM across steps
        nd = len(shape)
        return pl.BlockSpec(shape, lambda i, _nd=nd: (0,) * _nd)

    in_specs = [
        pl.BlockSpec((D, tb), lambda i: (0, i)),               # streamed lane-dense x tile
        resident(w_in_t.shape), resident(b_in_t.shape),
        resident(w_h_t.shape), resident(b_h_t.shape),
        resident(w_heads_t.shape), resident(b_heads_t.shape),
    ]
    out_specs = pl.BlockSpec((A, tb), lambda i: (0, i))        # lane-dense output tile

    bytes_in = x_t.size * x_t.dtype.itemsize + sum(int(p.size) * p.dtype.itemsize
                                                   for p in folded_params)
    bytes_out = b_pad * A * 4
    cost = pl.CostEstimate(
        flops=2 * b_pad * (D * H0 + H0 * H1 + H1 * A),
        transcendentals=0,
        bytes_accessed=int(bytes_in + bytes_out),
    )

    out_t = pl.pallas_call(
        fcca_ar_kernel,
        out_shape=jax.ShapeDtypeStruct((A, b_pad), jnp.float32),
        grid=grid,
        in_specs=in_specs,
        out_specs=out_specs,
        compiler_params=pltpu.CompilerParams(
            dimension_semantics=("parallel",),                 # megacore-shardable batch axis
            vmem_limit_bytes=32 * 1024 * 1024,                 # actual use << 32 MiB; safe on v7x (64 MiB)
        ),
        cost_estimate=cost,
    )(x_t, w_in_t, b_in_t, w_h_t, b_h_t, w_heads_t, b_heads_t)

    return out_t[:, :B].T                                      # back to [B, A]


# ----------------------------------------------------------------------------- init / reference
def init_params(key, input_dim, hidden_dims, output_dim):
    """Deterministic init mimicking nn.Linear's U(-1/sqrt(fan_in), 1/sqrt(fan_in))."""
    D = input_dim[0]
    H0, H1 = hidden_dims
    A = output_dim[0]
    ks = jax.random.split(key, 3)

    def linear(k, fan_in, fan_out):
        bound = 1.0 / (fan_in ** 0.5)
        kw, kb = jax.random.split(k)
        w = jax.random.uniform(kw, (fan_in, fan_out), jnp.float32, -bound, bound)
        b = jax.random.uniform(kb, (1, fan_out), jnp.float32, -bound, bound)
        return w, b

    w_in, b_in = linear(ks[0], D, H0)
    w_h, b_h = linear(ks[1], H0, H1)

    # heads: head 0 = Linear(H1, 1); heads i>=1 = Linear(H1+1, 1) where the extra
    # (last) input feature is the previous head's logit.
    kheads = jax.random.split(ks[2], A)
    w_x_cols, b_vals, w_prev_vals = [], [], []
    for i in range(A):
        fan_in = H1 if i == 0 else H1 + 1
        bound = 1.0 / (fan_in ** 0.5)
        kw, kb = jax.random.split(kheads[i])
        w_full = jax.random.uniform(kw, (fan_in,), jnp.float32, -bound, bound)
        b = jax.random.uniform(kb, (), jnp.float32, -bound, bound)
        w_x_cols.append(w_full[:H1])
        w_prev_vals.append(w_full[H1] if i > 0 else jnp.float32(0.0))
        b_vals.append(b)
    w_heads = jnp.stack(w_x_cols, axis=1)                              # [H1, A]
    b_heads = jnp.stack(b_vals)[None, :].astype(jnp.float32)           # [1, A]
    w_prev = jnp.stack([jnp.asarray(v, jnp.float32) for v in w_prev_vals])[None, :]  # [1, A]
    return (w_in, b_in, w_h, b_h, w_heads, b_heads, w_prev)


def reference_forward(states, params):
    """Pure-JAX reference mirroring the PyTorch forward semantics (sequential chain)."""
    w_in, b_in, w_h, b_h, w_heads, b_heads, w_prev = params
    h = jax.nn.relu(states @ w_in + b_in)
    h = jax.nn.relu(h @ w_h + b_h)
    proj = h @ w_heads + b_heads
    A = proj.shape[1]
    logits = [proj[:, 0]]
    for i in range(1, A):
        logits.append(proj[:, i] + w_prev[0, i] * logits[-1])
    # NOTE: the PyTorch module detaches the previous logit -- forward values are
    # identical; only gradients would differ if a backward pass were added.
    return jnp.stack(logits, axis=1)


# ----------------------------------------------------------------------------- test
if __name__ == "__main__":
    key = jax.random.PRNGKey(0)
    input_dim = (8,)          # state feature dim
    hidden_dims = (32, 32)    # small stand-in for (256, 256)
    output_dim = (4,)         # number of autoregressive action heads
    B = 600                   # exercises a 2-step grid (tb=512, b_pad=1024) and padding

    kp, kx = jax.random.split(key)
    params = init_params(kp, input_dim, hidden_dims, output_dim)
    states = jax.random.normal(kx, (B, input_dim[0]), jnp.float32)
    ref = reference_forward(states, params)

    # f32 path: tight correctness check (only differs by f32 reassociation of the fold).
    folded_f32 = fold_params(params, compute_dtype=jnp.float32)
    out_f32 = jax.block_until_ready(fcca_ar_forward(states, folded_f32))
    assert out_f32.shape == (B, output_dim[0]), f"bad shape {out_f32.shape}"
    assert jnp.allclose(out_f32, ref, atol=1e-5, rtol=1e-5), "f32 kernel mismatch vs reference"

    # default bf16 weight/activation path (f32 biases, accumulation, folded heads):
    folded_bf16 = fold_params(params)                 # compute_dtype defaults to bf16
    out_bf16 = jax.block_until_ready(fcca_ar_forward(states, folded_bf16))
    assert out_bf16.shape == (B, output_dim[0])
    assert bool(jnp.all(jnp.isfinite(out_bf16)))
    assert jnp.allclose(out_bf16, ref, atol=0.25, rtol=0.1), "bf16 kernel mismatch vs reference"

    print("KERNEL_OK")
</pallas_src>

<mosaic_0001>
module attributes {stable_mosaic.version = 11 : i64} {
  func.func @fcca_ar_kernel(%arg0: i32, %arg1: memref<8x512xf32, #tpu.memory_space<vmem>>, %arg2: memref<32x8xf32, #tpu.memory_space<vmem>>, %arg3: memref<32x1xf32, #tpu.memory_space<vmem>>, %arg4: memref<32x32xf32, #tpu.memory_space<vmem>>, %arg5: memref<32x1xf32, #tpu.memory_space<vmem>>, %arg6: memref<4x32xf32, #tpu.memory_space<vmem>>, %arg7: memref<4x1xf32, #tpu.memory_space<vmem>>, %arg8: memref<4x512xf32, #tpu.memory_space<vmem>>) attributes {dimension_semantics = [#tpu.dimension_semantics<parallel>], iteration_bounds = array<i64: 2>, scalar_prefetch = 0 : i64, scratch_operands = 0 : i64, tpu.core_type = #tpu.core_type<tc>, window_params = [{transform_indices = @transform_0, window_bounds = array<i64: 8, 512>}, {pipeline_mode = #tpu.pipeline_mode<synchronous>, transform_indices = @transform_1, window_bounds = array<i64: 32, 8>}, {pipeline_mode = #tpu.pipeline_mode<synchronous>, transform_indices = @transform_2, window_bounds = array<i64: 32, 1>}, {pipeline_mode = #tpu.pipeline_mode<synchronous>, transform_indices = @transform_3, window_bounds = array<i64: 32, 32>}, {pipeline_mode = #tpu.pipeline_mode<synchronous>, transform_indices = @transform_4, window_bounds = array<i64: 32, 1>}, {pipeline_mode = #tpu.pipeline_mode<synchronous>, transform_indices = @transform_5, window_bounds = array<i64: 4, 32>}, {pipeline_mode = #tpu.pipeline_mode<synchronous>, transform_indices = @transform_6, window_bounds = array<i64: 4, 1>}, {transform_indices = @transform_7, window_bounds = array<i64: 4, 512>}]} {
    %c0 = arith.constant 0 : index
    %c0_0 = arith.constant 0 : index
    %0 = vector.load %arg2[%c0, %c0_0] : memref<32x8xf32, #tpu.memory_space<vmem>>, vector<32x8xf32>
    %c0_1 = arith.constant 0 : index
    %c0_2 = arith.constant 0 : index
    %1 = vector.load %arg1[%c0_1, %c0_2] : memref<8x512xf32, #tpu.memory_space<vmem>>, vector<8x512xf32>
    %cst = arith.constant dense<0.000000e+00> : vector<32x512xf32>
    %2 = tpu.matmul %0, %1, %cst {dimension_numbers = #tpu.dot_dimension_numbers<[1], [0], [0], [1], [0, 0, 1, 1], [], []>} : vector<32x8xf32>, vector<8x512xf32>, vector<32x512xf32> -> vector<32x512xf32>
    %c0_3 = arith.constant 0 : index
    %c0_4 = arith.constant 0 : index
    %3 = vector.load %arg3[%c0_3, %c0_4] : memref<32x1xf32, #tpu.memory_space<vmem>>, vector<32x1xf32>
    %4 = vector.broadcast %3 : vector<32x1xf32> to vector<32x512xf32>
    %5 = arith.addf %2, %4 : vector<32x512xf32>
    %cst_5 = arith.constant 0.000000e+00 : f32
    %6 = vector.broadcast %cst_5 : f32 to vector<32x512xf32>
    %7 = arith.maximumf %5, %6 : vector<32x512xf32>
    %c0_6 = arith.constant 0 : index
    %c0_7 = arith.constant 0 : index
    %8 = vector.load %arg4[%c0_6, %c0_7] : memref<32x32xf32, #tpu.memory_space<vmem>>, vector<32x32xf32>
    %cst_8 = arith.constant dense<0.000000e+00> : vector<32x512xf32>
    %9 = tpu.matmul %8, %7, %cst_8 {dimension_numbers = #tpu.dot_dimension_numbers<[1], [0], [0], [1], [0, 0, 1, 1], [], []>} : vector<32x32xf32>, vector<32x512xf32>, vector<32x512xf32> -> vector<32x512xf32>
    %c0_9 = arith.constant 0 : index
    %c0_10 = arith.constant 0 : index
    %10 = vector.load %arg5[%c0_9, %c0_10] : memref<32x1xf32, #tpu.memory_space<vmem>>, vector<32x1xf32>
    %11 = vector.broadcast %10 : vector<32x1xf32> to vector<32x512xf32>
    %12 = arith.addf %9, %11 : vector<32x512xf32>
    %cst_11 = arith.constant 0.000000e+00 : f32
    %13 = vector.broadcast %cst_11 : f32 to vector<32x512xf32>
    %14 = arith.maximumf %12, %13 : vector<32x512xf32>
    %c0_12 = arith.constant 0 : index
    %c0_13 = arith.constant 0 : index
    %15 = vector.load %arg6[%c0_12, %c0_13] : memref<4x32xf32, #tpu.memory_space<vmem>>, vector<4x32xf32>
    %cst_14 = arith.constant dense<0.000000e+00> : vector<4x512xf32>
    %16 = tpu.matmul %15, %14, %cst_14 {dimension_numbers = #tpu.dot_dimension_numbers<[1], [0], [0], [1], [0, 0, 1, 1], [], []>} : vector<4x32xf32>, vector<32x512xf32>, vector<4x512xf32> -> vector<4x512xf32>
    %c0_15 = arith.constant 0 : index
    %c0_16 = arith.constant 0 : index
    %17 = vector.load %arg7[%c0_15, %c0_16] : memref<4x1xf32, #tpu.memory_space<vmem>>, vector<4x1xf32>
    %18 = vector.broadcast %17 : vector<4x1xf32> to vector<4x512xf32>
    %19 = arith.addf %16, %18 : vector<4x512xf32>
    %c0_17 = arith.constant 0 : index
    %c0_18 = arith.constant 0 : index
    %20 = vector.load %arg8[%c0_17, %c0_18] : memref<4x512xf32, #tpu.memory_space<vmem>>, vector<4x512xf32>
    tpu.vector_store %arg8[%c0_17, %c0_18], %19 {strides = array<i32>} : memref<4x512xf32, #tpu.memory_space<vmem>>, vector<4x512xf32>,
    return
  }
  func.func @transform_0(%arg0: i32) -> (i32, i32) {
    %c0_i32 = arith.constant 0 : i32
    %c0_i32_0 = arith.constant 0 : i32
    return %c0_i32, %arg0 : i32, i32
  }
  func.func @transform_1(%arg0: i32) -> (i32, i32) {
    %c0_i32 = arith.constant 0 : i32
    %c0_i32_0 = arith.constant 0 : i32
    %c0_i32_1 = arith.constant 0 : i32
    return %c0_i32, %c0_i32_0 : i32, i32
  }
  func.func @transform_2(%arg0: i32) -> (i32, i32) {
    %c0_i32 = arith.constant 0 : i32
    %c0_i32_0 = arith.constant 0 : i32
    %c0_i32_1 = arith.constant 0 : i32
    return %c0_i32, %c0_i32_0 : i32, i32
  }
  func.func @transform_3(%arg0: i32) -> (i32, i32) {
    %c0_i32 = arith.constant 0 : i32
    %c0_i32_0 = arith.constant 0 : i32
    %c0_i32_1 = arith.constant 0 : i32
    return %c0_i32, %c0_i32_0 : i32, i32
  }
  func.func @transform_4(%arg0: i32) -> (i32, i32) {
    %c0_i32 = arith.constant 0 : i32
    %c0_i32_0 = arith.constant 0 : i32
    %c0_i32_1 = arith.constant 0 : i32
    return %c0_i32, %c0_i32_0 : i32, i32
  }
  func.func @transform_5(%arg0: i32) -> (i32, i32) {
    %c0_i32 = arith.constant 0 : i32
    %c0_i32_0 = arith.constant 0 : i32
    %c0_i32_1 = arith.constant 0 : i32
    return %c0_i32, %c0_i32_0 : i32, i32
  }
  func.func @transform_6(%arg0: i32) -> (i32, i32) {
    %c0_i32 = arith.constant 0 : i32
    %c0_i32_0 = arith.constant 0 : i32
    %c0_i32_1 = arith.constant 0 : i32
    return %c0_i32, %c0_i32_0 : i32, i32
  }
  func.func @transform_7(%arg0: i32) -> (i32, i32) {
    %c0_i32 = arith.constant 0 : i32
    %c0_i32_0 = arith.constant 0 : i32
    return %c0_i32, %arg0 : i32, i32
  }
}

</mosaic_0001>

<llo_original>
// kernel: tpu_custom_call.1
$region0: #{tpu_custom_call.1}
  #allocation0 [shape = 'u32[]', space=smem, size = 0x4, offset = 0x4, fixed_abs, tag = 'smem constant byte address 0x4 - core index']
  #allocation1 [shape = 'u32[144,128]{1,0:T(1,128)}', space=vmem, size = 0x12000, scoped, tag = 'internal scratch']
  %s0 = inlined_call_operand.vmem [shape: f32[8,1024], index: 0, kind: input, shape index: {}]
  %s1 = inlined_call_operand.vmem [shape: f32[32,8], index: 1, kind: input, shape index: {}]
  %s2 = inlined_call_operand.vmem [shape: f32[32,1], index: 2, kind: input, shape index: {}]
  %s3 = inlined_call_operand.vmem [shape: f32[32,32], index: 3, kind: input, shape index: {}]
  %s4 = inlined_call_operand.vmem [shape: f32[32,1], index: 4, kind: input, shape index: {}]
  %s5 = inlined_call_operand.vmem [shape: f32[4,32], index: 5, kind: input, shape index: {}]
  %s6 = inlined_call_operand.vmem [shape: f32[4,1], index: 6, kind: input, shape index: {}]
  %s7 = inlined_call_operand.hbm [shape: f32[4,1024], index: 7, kind: output, shape index: {}]
  %s8 = sld [smem:[#allocation0]]
  $region61: #{tpu_custom_call.1} parent=0
    _
  %s10 = ssub.s32 1, %s8
  %s11 = scalar_select 0, %s10, %s8
  $region1: #{tpu_custom_call.1} parent=0
    #allocation2 [shape = 'u8[16384]{0}', space=vmem, size = 0x4000, scoped, tag = 'output window, operand 0']
    #allocation3 [shape = 's32[2]{0}', space=sflag, size = 0x8, scoped, tag = 'scoped memory for tpu_custom_call.1']
    %12 = vsyncpa [#allocation3], 0
    %s13 = scalar_lea.sflag [#allocation3], 1
    %14 = vsyncpa %s13, 0
    loop: start=0, step=1, limit=4
    $region2: #{tpu_custom_call.1} parent=1 // loop_pre_header
      _
    $region3: #{tpu_custom_call.1} parent=1 // loop_header
      %s16 = sphi 0, %s20
      %p17 = scmp.ge.s32.totalorder %s16, 4
      %s26 = sphi 0, %s28
      %s29 = sphi 0, %s26
      %s30 = sphi 0, %s29
      %s46 = sphi 0, %s30
      %s50 = sphi 0, %s50
      %s52 = sphi 0, %s50
      %s53 = sphi 0, %s52
      %s67 = sphi 0, %s53
      %s71 = sphi 0, %s71
      %s73 = sphi 0, %s71
      %s74 = sphi 0, %s73
      %s88 = sphi 0, %s74
      %s92 = sphi 0, %s92
      %s94 = sphi 0, %s92
      %s95 = sphi 0, %s94
      %s109 = sphi 0, %s95
      %s113 = sphi 0, %s113
      %s115 = sphi 0, %s113
      %s116 = sphi 0, %s115
      %s130 = sphi 0, %s116
      %s134 = sphi 0, %s134
      %s136 = sphi 0, %s134
      %s137 = sphi 0, %s136
      %s151 = sphi 0, %s137
      %s155 = sphi 0, %s155
      %s157 = sphi 0, %s155
      %s158 = sphi 0, %s157
      %s172 = sphi 0, %s158
      %s178 = sphi 0, %s180
      %s181 = sphi 0, %s178
      %s182 = sphi 0, %s181
      %s198 = sphi 0, %s182
    $region4: #{tpu_custom_call.1} parent=1 // loop_header_branch
      %19 = sbr.rel (%p17) target = $region8
    $region5: #{tpu_custom_call.1} parent=1 // loop_body
      %s21 = ssub.s32 %s16, 1
      %s22 = ssub.s32 %s16, 2
      %s23 = sadd.s32 %s16, 1
      %s24 = ssub.s32 %s16, %s23
      %p25 = scmp.eq.s32.totalorder %s24, 0
      %s27 = sadd.s32 %s26, 1
      %s28 = scalar_select %p25, %s26, %s27
      %p31 = pneg %p25
      %p32 = scmp.eq.s32.totalorder %s16, 1
      %p33 = por %p31, %p32
      %p34 = scmp.ne.s32.totalorder %s26, %s29
      %p35 = scmp.eq.s32.totalorder %s16, 0
      %p36 = por %p34, %p35
      %p37 = scmp.ne.s32.totalorder %s26, %s29
      %p38 = scmp.eq.s32.totalorder %s21, 1
      %p39 = por %p37, %p38
      %p40 = scmp.ne.s32.totalorder %s29, %s30
      %p41 = scmp.eq.s32.totalorder %s21, 0
      %p42 = por %p40, %p41
      %p43 = scmp.ne.s32.totalorder %s29, %s30
      %p44 = scmp.eq.s32.totalorder %s22, 1
      %p45 = por %p43, %p44
      %p47 = scmp.ne.s32.totalorder %s30, %s46
      %p48 = scmp.eq.s32.totalorder %s22, 0
      %p49 = por %p47, %p48
      %s51 = sadd.s32 %s50, 1
      %p54 = scmp.eq.s32.totalorder %s16, 1
      %p55 = scmp.ne.s32.totalorder %s50, %s52
      %p56 = scmp.eq.s32.totalorder %s16, 0
      %p57 = por %p55, %p56
      %p58 = scmp.ne.s32.totalorder %s50, %s52
      %p59 = scmp.eq.s32.totalorder %s21, 1
      %p60 = por %p58, %p59
      %p61 = scmp.ne.s32.totalorder %s52, %s53
      %p62 = scmp.eq.s32.totalorder %s21, 0
      %p63 = por %p61, %p62
      %p64 = scmp.ne.s32.totalorder %s52, %s53
      %p65 = scmp.eq.s32.totalorder %s22, 1
      %p66 = por %p64, %p65
      %p68 = scmp.ne.s32.totalorder %s53, %s67
      %p69 = scmp.eq.s32.totalorder %s22, 0
      %p70 = por %p68, %p69
      %s72 = sadd.s32 %s71, 1
      %p75 = scmp.eq.s32.totalorder %s16, 1
      %p76 = scmp.ne.s32.totalorder %s71, %s73
      %p77 = scmp.eq.s32.totalorder %s16, 0
      %p78 = por %p76, %p77
      %p79 = scmp.ne.s32.totalorder %s71, %s73
      %p80 = scmp.eq.s32.totalorder %s21, 1
      %p81 = por %p79, %p80
      %p82 = scmp.ne.s32.totalorder %s73, %s74
      %p83 = scmp.eq.s32.totalorder %s21, 0
      %p84 = por %p82, %p83
      %p85 = scmp.ne.s32.totalorder %s73, %s74
      %p86 = scmp.eq.s32.totalorder %s22, 1
      %p87 = por %p85, %p86
      %p89 = scmp.ne.s32.totalorder %s74, %s88
      %p90 = scmp.eq.s32.totalorder %s22, 0
      %p91 = por %p89, %p90
      %s93 = sadd.s32 %s92, 1
      %p96 = scmp.eq.s32.totalorder %s16, 1
      %p97 = scmp.ne.s32.totalorder %s92, %s94
      %p98 = scmp.eq.s32.totalorder %s16, 0
      %p99 = por %p97, %p98
      %p100 = scmp.ne.s32.totalorder %s92, %s94
      %p101 = scmp.eq.s32.totalorder %s21, 1
      %p102 = por %p100, %p101
      %p103 = scmp.ne.s32.totalorder %s94, %s95
      %p104 = scmp.eq.s32.totalorder %s21, 0
      %p105 = por %p103, %p104
      %p106 = scmp.ne.s32.totalorder %s94, %s95
      %p107 = scmp.eq.s32.totalorder %s22, 1
      %p108 = por %p106, %p107
      %p110 = scmp.ne.s32.totalorder %s95, %s109
      %p111 = scmp.eq.s32.totalorder %s22, 0
      %p112 = por %p110, %p111
      %s114 = sadd.s32 %s113, 1
      %p117 = scmp.eq.s32.totalorder %s16, 1
      %p118 = scmp.ne.s32.totalorder %s113, %s115
      %p119 = scmp.eq.s32.totalorder %s16, 0
      %p120 = por %p118, %p119
      %p121 = scmp.ne.s32.totalorder %s113, %s115
      %p122 = scmp.eq.s32.totalorder %s21, 1
      %p123 = por %p121, %p122
      %p124 = scmp.ne.s32.totalorder %s115, %s116
      %p125 = scmp.eq.s32.totalorder %s21, 0
      %p126 = por %p124, %p125
      %p127 = scmp.ne.s32.totalorder %s115, %s116
      %p128 = scmp.eq.s32.totalorder %s22, 1
      %p129 = por %p127, %p128
      %p131 = scmp.ne.s32.totalorder %s116, %s130
      %p132 = scmp.eq.s32.totalorder %s22, 0
      %p133 = por %p131, %p132
      %s135 = sadd.s32 %s134, 1
      %p138 = scmp.eq.s32.totalorder %s16, 1
      %p139 = scmp.ne.s32.totalorder %s134, %s136
      %p140 = scmp.eq.s32.totalorder %s16, 0
      %p141 = por %p139, %p140
      %p142 = scmp.ne.s32.totalorder %s134, %s136
      %p143 = scmp.eq.s32.totalorder %s21, 1
      %p144 = por %p142, %p143
      %p145 = scmp.ne.s32.totalorder %s136, %s137
      %p146 = scmp.eq.s32.totalorder %s21, 0
      %p147 = por %p145, %p146
      %p148 = scmp.ne.s32.totalorder %s136, %s137
      %p149 = scmp.eq.s32.totalorder %s22, 1
      %p150 = por %p148, %p149
      %p152 = scmp.ne.s32.totalorder %s137, %s151
      %p153 = scmp.eq.s32.totalorder %s22, 0
      %p154 = por %p152, %p153
      %s156 = sadd.s32 %s155, 1
      %p159 = scmp.eq.s32.totalorder %s16, 1
      %p160 = scmp.ne.s32.totalorder %s155, %s157
      %p161 = scmp.eq.s32.totalorder %s16, 0
      %p162 = por %p160, %p161
      %p163 = scmp.ne.s32.totalorder %s155, %s157
      %p164 = scmp.eq.s32.totalorder %s21, 1
      %p165 = por %p163, %p164
      %p166 = scmp.ne.s32.totalorder %s157, %s158
      %p167 = scmp.eq.s32.totalorder %s21, 0
      %p168 = por %p166, %p167
      %p169 = scmp.ne.s32.totalorder %s157, %s158
      %p170 = scmp.eq.s32.totalorder %s22, 1
      %p171 = por %p169, %p170
      %p173 = scmp.ne.s32.totalorder %s158, %s172
      %p174 = scmp.eq.s32.totalorder %s22, 0
      %p175 = por %p173, %p174
      %s176 = ssub.s32 %s16, %s23
      %p177 = scmp.eq.s32.totalorder %s176, 0
      %s179 = sadd.s32 %s178, 1
      %s180 = scalar_select %p177, %s178, %s179
      %p183 = pneg %p177
      %p184 = scmp.eq.s32.totalorder %s16, 1
      %p185 = por %p183, %p184
      %p186 = scmp.ne.s32.totalorder %s178, %s181
      %p187 = scmp.eq.s32.totalorder %s16, 0
      %p188 = por %p186, %p187
      %p189 = scmp.ne.s32.totalorder %s178, %s181
      %p190 = scmp.eq.s32.totalorder %s21, 1
      %p191 = por %p189, %p190
      %p192 = scmp.ne.s32.totalorder %s181, %s182
      %p193 = scmp.eq.s32.totalorder %s21, 0
      %p194 = por %p192, %p193
      %p195 = scmp.ne.s32.totalorder %s181, %s182
      %p196 = scmp.eq.s32.totalorder %s22, 1
      %p197 = por %p195, %p196
      %p199 = scmp.ne.s32.totalorder %s182, %s198
      %p200 = scmp.eq.s32.totalorder %s22, 0
      %p201 = por %p199, %p200
      %p202 = scmp.le.s32.totalorder 1, %s16
      %p203 = scmp.lt.s32.totalorder %s16, 3
      %p204 = pnand %p202, %p203
      %p205 = pneg %p204
      // Predicated region
      $region9: #{tpu_custom_call.1} parent=5 // pred_check
        _
      $region10: #{tpu_custom_call.1} parent=5 // pred_check_branch
        %207 = sbr.rel (%p204) target = $region12
      $region11: #{tpu_custom_call.1} parent=5 // pred_region
        %s208 = ssub.s32 %s16, 1
        // Predicated region
        $region13: #{tpu_custom_call.1} parent=11 // pred_check
          %p209 = pneg %p63
        $region14: #{tpu_custom_call.1} parent=11 // pred_check_branch
          %211 = sbr.rel (%p209) target = $region16
        $region15: #{tpu_custom_call.1} parent=11 // pred_region
          _
        $region16: #{tpu_custom_call.1} parent=11 // pred_fallthru
          _
        // Predicated region
        $region17: #{tpu_custom_call.1} parent=11 // pred_check
          %p212 = pneg %p84
        $region18: #{tpu_custom_call.1} parent=11 // pred_check_branch
          %214 = sbr.rel (%p212) target = $region20
        $region19: #{tpu_custom_call.1} parent=11 // pred_region
          _
        $region20: #{tpu_custom_call.1} parent=11 // pred_fallthru
          _
        // Predicated region
        $region21: #{tpu_custom_call.1} parent=11 // pred_check
          %p215 = pneg %p105
        $region22: #{tpu_custom_call.1} parent=11 // pred_check_branch
          %217 = sbr.rel (%p215) target = $region24
        $region23: #{tpu_custom_call.1} parent=11 // pred_region
          _
        $region24: #{tpu_custom_call.1} parent=11 // pred_fallthru
          _
        // Predicated region
        $region25: #{tpu_custom_call.1} parent=11 // pred_check
          %p218 = pneg %p126
        $region26: #{tpu_custom_call.1} parent=11 // pred_check_branch
          %220 = sbr.rel (%p218) target = $region28
        $region27: #{tpu_custom_call.1} parent=11 // pred_region
          _
        $region28: #{tpu_custom_call.1} parent=11 // pred_fallthru
          _
        // Predicated region
        $region29: #{tpu_custom_call.1} parent=11 // pred_check
          %p221 = pneg %p147
        $region30: #{tpu_custom_call.1} parent=11 // pred_check_branch
          %223 = sbr.rel (%p221) target = $region32
        $region31: #{tpu_custom_call.1} parent=11 // pred_region
          _
        $region32: #{tpu_custom_call.1} parent=11 // pred_fallthru
          _
        // Predicated region
        $region33: #{tpu_custom_call.1} parent=11 // pred_check
          %p224 = pneg %p168
        $region34: #{tpu_custom_call.1} parent=11 // pred_check_branch
          %226 = sbr.rel (%p224) target = $region36
        $region35: #{tpu_custom_call.1} parent=11 // pred_region
          _
        $region36: #{tpu_custom_call.1} parent=11 // pred_fallthru
          _
      $region12: #{tpu_custom_call.1} parent=5 // pred_fallthru
        _
      %p227 = scmp.lt.s32.totalorder %s16, 2
      // Predicated region
      $region37: #{tpu_custom_call.1} parent=5 // pred_check
        %p228 = pneg %p227
      $region38: #{tpu_custom_call.1} parent=5 // pred_check_branch
        %230 = sbr.rel (%p228) target = $region40
      $region39: #{tpu_custom_call.1} parent=5 // pred_region
        // Predicated region
        $region41: #{tpu_custom_call.1} parent=39 // pred_check
          %p231 = pneg %p36
        $region42: #{tpu_custom_call.1} parent=39 // pred_check_branch
          %233 = sbr.rel (%p231) target = $region44
        $region43: #{tpu_custom_call.1} parent=39 // pred_region
          %s234 = smul.u32 4, %s16
          %p235 = scmp.lt.s32.totalorder %s234, 7
          %s236 = scalar_select %p235, %s234, 7
          %s237 = smul.addr %s236, 8
          %s238 = scalar_lea.vmem %s0, %s237
          %s239 = smul.u32 4, %s16
        $region44: #{tpu_custom_call.1} parent=39 // pred_fallthru
          _
      $region40: #{tpu_custom_call.1} parent=5 // pred_fallthru
        _
      %p240 = scmp.le.s32.totalorder 1, %s16
      %p241 = scmp.lt.s32.totalorder %s16, 3
      %p242 = pnand %p240, %p241
      %p243 = pneg %p242
      // Predicated region
      $region45: #{tpu_custom_call.1} parent=5 // pred_check
        _
      $region46: #{tpu_custom_call.1} parent=5 // pred_check_branch
        %245 = sbr.rel (%p242) target = $region48
      $region47: #{tpu_custom_call.1} parent=5 // pred_region
        %s246 = ssub.s32 %s16, 1
        %s247 = smul.u32 4, %s21
        %p248 = scmp.lt.s32.totalorder %s247, 7
        %s249 = scalar_select %p248, %s247, 7
        %s250 = smul.addr %s249, 8
        %s251 = scalar_lea.vmem %s0, %s250
        %p252 = pneg %p42
        %p253 = pneg %p39
        %p254 = pneg %p63
        %p255 = pneg %p60
        %p256 = pneg %p84
        %p257 = pneg %p81
        %p258 = pneg %p105
        %p259 = pneg %p102
        %p260 = pneg %p126
        %p261 = pneg %p123
        %p262 = pneg %p147
        %p263 = pneg %p144
        %p264 = pneg %p168
        %p265 = pneg %p165
        %p266 = pneg %p194
        %p267 = pneg %p191
        %s268 = sand.u32 %s181, 1
        %s269 = scalar_lea.sflag [#allocation3], %s268
        %s270 = sand.u32 %s181, 1
        %s271 = smul.addr %s270, 16
        %s272 = scalar_lea.vmem [#allocation2], %s271
        %s273 = smul.u32 4, %s21
        %p274 = scmp.lt.s32.totalorder %s273, 7
        %s275 = scalar_select %p274, %s273, 7
        %s276 = smul.addr %s275, 8
        %s277 = scalar_lea.vmem %s0, %s276
        %s278 = smul.u32 4, %s21
        %s279 = smul.u32 4, %s21
        %v280 = vld [vmem:[%s1] sm:$0xff]
        %v281 = vld [vmem:[%s1 + $0x8] sm:$0xff]
        %v282 = vld [vmem:[%s1 + $0x10] sm:$0xff]
        %v283 = vld [vmem:[%s1 + $0x18] sm:$0xff]
        %v284 = vld [vmem:[%s277] sm:$0xff]
        %v285 = vld [vmem:[%s277 + $0x8] sm:$0xff]
        %v286 = vld [vmem:[%s277 + $0x10] sm:$0xff]
        %v287 = vld [vmem:[%s277 + $0x18] sm:$0xff]
        %v288 = vld [vmem:[%s2] sm:$0xff]
        %v289 = vld [vmem:[%s2 + $0x8] sm:$0xff]
        %v290 = vld [vmem:[%s2 + $0x10] sm:$0xff]
        %v291 = vld [vmem:[%s2 + $0x18] sm:$0xff]
        %293 = vset.pattern.permute.xlu0 0
        %294 = vperm.xlu0 %293, %v288
        %v295 = vpop.permute.xlu0 %294
        %298 = vset.pattern.permute.xlu0 0
        %299 = vperm.xlu0 %298, %v289
        %v300 = vpop.permute.xlu0 %299
        %303 = vset.pattern.permute.xlu0 0
        %304 = vperm.xlu0 %303, %v290
        %v305 = vpop.permute.xlu0 %304
        %308 = vset.pattern.permute.xlu0 0
        %309 = vperm.xlu0 %308, %v291
        %v310 = vpop.permute.xlu0 %309
        %vm312 = vcmask 64512
        %v314 = vsel %vm312, %v280, 0
        %v317 = vsel %vm312, %v281, 0
        %v320 = vsel %vm312, %v282, 0
        %v323 = vsel %vm312, %v283, 0
        %325 = vmatprep.subr.mxu0 %v285
        %326 = vmatpush1.msra.mxu0 %v284
        %327 = vmatprep.subr.mxu0 0.0
        %328 = vmatpush1.msra.mxu0 0.0
        %329 = vmatprep.subr.mxu0 0.0
        %330 = vmatpush1.msra.mxu0 0.0
        %331 = vmatprep.subr.mxu0 0.0
        %332 = vmatpush1.msra.mxu0 0.0
        %333 = vmatprep.subr.mxu0 0.0
        %334 = vmatpush1.msra.mxu0 0.0
        %335 = vmatprep.subr.mxu0 0.0
        %336 = vmatpush1.msra.mxu0 0.0
        %337 = vmatprep.subr.mxu0 0.0
        %338 = vmatpush1.msra.mxu0 0.0
        %339 = vmatprep.subr.mxu0 0.0
        %340 = vmatpush1.msra.mxu0 0.0
        %341 = vmatprep.subr.mxu0 0.0
        %342 = vmatpush1.msra.mxu0 0.0
        %343 = vmatprep.subr.mxu0 0.0
        %344 = vmatpush1.msra.mxu0 0.0
        %345 = vmatprep.subr.mxu0 0.0
        %346 = vmatpush1.msra.mxu0 0.0
        %347 = vmatprep.subr.mxu0 0.0
        %348 = vmatpush1.msra.mxu0 0.0
        %349 = vmatprep.subr.mxu0 0.0
        %350 = vmatpush1.msra.mxu0 0.0
        %351 = vmatprep.subr.mxu0 0.0
        %352 = vmatpush1.msra.mxu0 0.0
        %353 = vmatprep.subr.mxu0 0.0
        %354 = vmatpush1.msra.mxu0 0.0
        %355 = vmatprep.subr.mxu0 0.0
        %356 = vmatpush1.msra.mxu0 0.0
        %357 = vmatprep.subr.mxu0 0.0
        %358 = vmatpush1.msra.mxu0 0.0
        %359 = vmatprep.subr.mxu0 0.0
        %360 = vmatpush1.msra.mxu0 0.0
        %361 = vmatprep.subr.mxu0 0.0
        %362 = vmatpush1.msra.mxu0 0.0
        %363 = vmatprep.subr.mxu0 0.0
        %364 = vmatpush1.msra.mxu0 0.0
        %365 = vmatprep.subr.mxu0 0.0
        %366 = vmatpush1.msra.mxu0 0.0
        %367 = vmatprep.subr.mxu0 0.0
        %368 = vmatpush1.msra.mxu0 0.0
        %369 = vmatprep.subr.mxu0 0.0
        %370 = vmatpush1.msra.mxu0 0.0
        %371 = vmatprep.subr.mxu0 0.0
        %372 = vmatpush1.msra.mxu0 0.0
        %373 = vmatprep.subr.mxu0 0.0
        %374 = vmatpush1.msra.mxu0 0.0
        %375 = vmatprep.subr.mxu0 0.0
        %376 = vmatpush1.msra.mxu0 0.0
        %377 = vmatprep.subr.mxu0 0.0
        %378 = vmatpush1.msra.mxu0 0.0
        %379 = vmatprep.subr.mxu0 0.0
        %380 = vmatpush1.msra.mxu0 0.0
        %381 = vmatprep.subr.mxu0 0.0
        %382 = vmatpush1.msra.mxu0 0.0
        %383 = vmatprep.subr.mxu0 0.0
        %384 = vmatpush1.msra.mxu0 0.0
        %385 = vmatprep.subr.mxu0 0.0
        %386 = vmatpush1.msra.mxu0 0.0
        %387 = vmatprep.subr.mxu0 0.0
        %388 = vmatpush1.msra.mxu0 0.0
        %389 = vmatprep.mubr.f32.mxu0 0.0
        %390 = vmatmul.mubr.f32.gmra.mrb[0].mxu0 %v314
        %v391 = vpop.f32.mrb[0].mxu0
        %v392 = vadd.f32 %v295, %v391
        %v393 = vpop.f32.mrb[0].mxu0
        %v394 = vadd.f32 %v295, %v393
        %395 = vmatprep.mubr.f32.mxu0 0.0
        %396 = vmatmul.mubr.f32.gmra.mrb[0].mxu0 %v317
        %v397 = vpop.f32.mrb[0].mxu0
        %v398 = vadd.f32 %v300, %v397
        %v399 = vpop.f32.mrb[0].mxu0
        %v400 = vadd.f32 %v300, %v399
        %401 = vmatprep.mubr.f32.mxu0 0.0
        %402 = vmatmul.mubr.f32.gmra.mrb[0].mxu0 %v320
        %v403 = vpop.f32.mrb[0].mxu0
        %v404 = vadd.f32 %v305, %v403
        %v405 = vpop.f32.mrb[0].mxu0
        %v406 = vadd.f32 %v305, %v405
        %407 = vmatprep.mubr.f32.mxu0 0.0
        %408 = vmatmul.mubr.f32.gmra.mrb[0].mxu0 %v323
        %v409 = vpop.f32.mrb[0].mxu0
        %v410 = vadd.f32 %v310, %v409
        %v411 = vpop.f32.mrb[0].mxu0
        %v412 = vadd.f32 %v310, %v411
        %413 = vdwg.mxu0
        %414 = vmatprep.subr.mxu0 %v287
        %415 = vmatpush1.msra.mxu0 %v286
        %416 = vmatprep.subr.mxu0 0.0
        %417 = vmatpush1.msra.mxu0 0.0
        %418 = vmatprep.subr.mxu0 0.0
        %419 = vmatpush1.msra.mxu0 0.0
        %420 = vmatprep.subr.mxu0 0.0
        %421 = vmatpush1.msra.mxu0 0.0
        %422 = vmatprep.subr.mxu0 0.0
        %423 = vmatpush1.msra.mxu0 0.0
        %424 = vmatprep.subr.mxu0 0.0
        %425 = vmatpush1.msra.mxu0 0.0
        %426 = vmatprep.subr.mxu0 0.0
        %427 = vmatpush1.msra.mxu0 0.0
        %428 = vmatprep.subr.mxu0 0.0
        %429 = vmatpush1.msra.mxu0 0.0
        %430 = vmatprep.subr.mxu0 0.0
        %431 = vmatpush1.msra.mxu0 0.0
        %432 = vmatprep.subr.mxu0 0.0
        %433 = vmatpush1.msra.mxu0 0.0
        %434 = vmatprep.subr.mxu0 0.0
        %435 = vmatpush1.msra.mxu0 0.0
        %436 = vmatprep.subr.mxu0 0.0
        %437 = vmatpush1.msra.mxu0 0.0
        %438 = vmatprep.subr.mxu0 0.0
        %439 = vmatpush1.msra.mxu0 0.0
        %440 = vmatprep.subr.mxu0 0.0
        %441 = vmatpush1.msra.mxu0 0.0
        %442 = vmatprep.subr.mxu0 0.0
        %443 = vmatpush1.msra.mxu0 0.0
        %444 = vmatprep.subr.mxu0 0.0
        %445 = vmatpush1.msra.mxu0 0.0
        %446 = vmatprep.subr.mxu0 0.0
        %447 = vmatpush1.msra.mxu0 0.0
        %448 = vmatprep.subr.mxu0 0.0
        %449 = vmatpush1.msra.mxu0 0.0
        %450 = vmatprep.subr.mxu0 0.0
        %451 = vmatpush1.msra.mxu0 0.0
        %452 = vmatprep.subr.mxu0 0.0
        %453 = vmatpush1.msra.mxu0 0.0
        %454 = vmatprep.subr.mxu0 0.0
        %455 = vmatpush1.msra.mxu0 0.0
        %456 = vmatprep.subr.mxu0 0.0
        %457 = vmatpush1.msra.mxu0 0.0
        %458 = vmatprep.subr.mxu0 0.0
        %459 = vmatpush1.msra.mxu0 0.0
        %460 = vmatprep.subr.mxu0 0.0
        %461 = vmatpush1.msra.mxu0 0.0
        %462 = vmatprep.subr.mxu0 0.0
        %463 = vmatpush1.msra.mxu0 0.0
        %464 = vmatprep.subr.mxu0 0.0
        %465 = vmatpush1.msra.mxu0 0.0
        %466 = vmatprep.subr.mxu0 0.0
        %467 = vmatpush1.msra.mxu0 0.0
        %468 = vmatprep.subr.mxu0 0.0
        %469 = vmatpush1.msra.mxu0 0.0
        %470 = vmatprep.subr.mxu0 0.0
        %471 = vmatpush1.msra.mxu0 0.0
        %472 = vmatprep.subr.mxu0 0.0
        %473 = vmatpush1.msra.mxu0 0.0
        %474 = vmatprep.subr.mxu0 0.0
        %475 = vmatpush1.msra.mxu0 0.0
        %476 = vmatprep.subr.mxu0 0.0
        %477 = vmatpush1.msra.mxu0 0.0
        %478 = vmatprep.mubr.f32.mxu0 0.0
        %479 = vmatmul.mubr.f32.gmra.mrb[0].mxu0 %v314
        %v480 = vpop.f32.mrb[0].mxu0
        %v481 = vadd.f32 %v295, %v480
        %v482 = vpop.f32.mrb[0].mxu0
        %v483 = vadd.f32 %v295, %v482
        %484 = vmatprep.mubr.f32.mxu0 0.0
        %485 = vmatmul.mubr.f32.gmra.mrb[0].mxu0 %v317
        %v486 = vpop.f32.mrb[0].mxu0
        %v487 = vadd.f32 %v300, %v486
        %v488 = vpop.f32.mrb[0].mxu0
        %v489 = vadd.f32 %v300, %v488
        %490 = vmatprep.mubr.f32.mxu0 0.0
        %491 = vmatmul.mubr.f32.gmra.mrb[0].mxu0 %v320
        %v492 = vpop.f32.mrb[0].mxu0
        %v493 = vadd.f32 %v305, %v492
        %v494 = vpop.f32.mrb[0].mxu0
        %v495 = vadd.f32 %v305, %v494
        %496 = vmatprep.mubr.f32.mxu0 0.0
        %497 = vmatmul.mubr.f32.gmra.mrb[0].mxu0 %v323
        %v498 = vpop.f32.mrb[0].mxu0
        %v499 = vadd.f32 %v310, %v498
        %v500 = vpop.f32.mrb[0].mxu0
        %v501 = vadd.f32 %v310, %v500
        %502 = vdwg.mxu0
        %v503 = vmax.f32 %v392, 0.0
        %v504 = vmax.f32 %v394, 0.0
        %v505 = vmax.f32 %v481, 0.0
        %v506 = vmax.f32 %v483, 0.0
        %v507 = vmax.f32 %v398, 0.0
        %v508 = vmax.f32 %v400, 0.0
        %v509 = vmax.f32 %v487, 0.0
        %v510 = vmax.f32 %v489, 0.0
        %v511 = vmax.f32 %v404, 0.0
        %v512 = vmax.f32 %v406, 0.0
        %v513 = vmax.f32 %v493, 0.0
        %v514 = vmax.f32 %v495, 0.0
        %v515 = vmax.f32 %v410, 0.0
        %v516 = vmax.f32 %v412, 0.0
        %v517 = vmax.f32 %v499, 0.0
        %v518 = vmax.f32 %v501, 0.0
        %v519 = vld [vmem:[%s3] sm:$0xff]
        %v520 = vld [vmem:[%s3 + $0x8] sm:$0xff]
        %v521 = vld [vmem:[%s3 + $0x10] sm:$0xff]
        %v522 = vld [vmem:[%s3 + $0x18] sm:$0xff]
        %v523 = vld [vmem:[%s4] sm:$0xff]
        %v524 = vld [vmem:[%s4 + $0x8] sm:$0xff]
        %v525 = vld [vmem:[%s4 + $0x10] sm:$0xff]
        %v526 = vld [vmem:[%s4 + $0x18] sm:$0xff]
        %528 = vset.pattern.permute.xlu0 0
        %529 = vperm.xlu0 %528, %v523
        %v530 = vpop.permute.xlu0 %529
        %533 = vset.pattern.permute.xlu0 0
        %534 = vperm.xlu0 %533, %v524
        %v535 = vpop.permute.xlu0 %534
        %538 = vset.pattern.permute.xlu0 0
        %539 = vperm.xlu0 %538, %v525
        %v540 = vpop.permute.xlu0 %539
        %543 = vset.pattern.permute.xlu0 0
        %544 = vperm.xlu0 %543, %v526
        %v545 = vpop.permute.xlu0 %544
        %vm547 = vcmask 261120
        %v549 = vsel %vm547, %v519, 0
        %v552 = vsel %vm547, %v520, 0
        %v555 = vsel %vm547, %v521, 0
        %v558 = vsel %vm547, %v522, 0
        %560 = vmatprep.subr.mxu0 %v504
        %561 = vmatpush1.msra.mxu0 %v503
        %562 = vmatprep.subr.mxu0 %v508
        %563 = vmatpush1.msra.mxu0 %v507
        %564 = vmatprep.subr.mxu0 %v512
        %565 = vmatpush1.msra.mxu0 %v511
        %566 = vmatprep.subr.mxu0 %v516
        %567 = vmatpush1.msra.mxu0 %v515
        %568 = vmatprep.subr.mxu0 0.0
        %569 = vmatpush1.msra.mxu0 0.0
        %570 = vmatprep.subr.mxu0 0.0
        %571 = vmatpush1.msra.mxu0 0.0
        %572 = vmatprep.subr.mxu0 0.0
        %573 = vmatpush1.msra.mxu0 0.0
        %574 = vmatprep.subr.mxu0 0.0
        %575 = vmatpush1.msra.mxu0 0.0
        %576 = vmatprep.subr.mxu0 0.0
        %577 = vmatpush1.msra.mxu0 0.0
        %578 = vmatprep.subr.mxu0 0.0
        %579 = vmatpush1.msra.mxu0 0.0
        %580 = vmatprep.subr.mxu0 0.0
        %581 = vmatpush1.msra.mxu0 0.0
        %582 = vmatprep.subr.mxu0 0.0
        %583 = vmatpush1.msra.mxu0 0.0
        %584 = vmatprep.subr.mxu0 0.0
        %585 = vmatpush1.msra.mxu0 0.0
        %586 = vmatprep.subr.mxu0 0.0
        %587 = vmatpush1.msra.mxu0 0.0
        %588 = vmatprep.subr.mxu0 0.0
        %589 = vmatpush1.msra.mxu0 0.0
        %590 = vmatprep.subr.mxu0 0.0
        %591 = vmatpush1.msra.mxu0 0.0
        %592 = vmatprep.subr.mxu0 0.0
        %593 = vmatpush1.msra.mxu0 0.0
        %594 = vmatprep.subr.mxu0 0.0
        %595 = vmatpush1.msra.mxu0 0.0
        %596 = vmatprep.subr.mxu0 0.0
        %597 = vmatpush1.msra.mxu0 0.0
        %598 = vmatprep.subr.mxu0 0.0
        %599 = vmatpush1.msra.mxu0 0.0
        %600 = vmatprep.subr.mxu0 0.0
        %601 = vmatpush1.msra.mxu0 0.0
        %602 = vmatprep.subr.mxu0 0.0
        %603 = vmatpush1.msra.mxu0 0.0
        %604 = vmatprep.subr.mxu0 0.0
        %605 = vmatpush1.msra.mxu0 0.0
        %606 = vmatprep.subr.mxu0 0.0
        %607 = vmatpush1.msra.mxu0 0.0
        %608 = vmatprep.subr.mxu0 0.0
        %609 = vmatpush1.msra.mxu0 0.0
        %610 = vmatprep.subr.mxu0 0.0
        %611 = vmatpush1.msra.mxu0 0.0
        %612 = vmatprep.subr.mxu0 0.0
        %613 = vmatpush1.msra.mxu0 0.0
        %614 = vmatprep.subr.mxu0 0.0
        %615 = vmatpush1.msra.mxu0 0.0
        %616 = vmatprep.subr.mxu0 0.0
        %617 = vmatpush1.msra.mxu0 0.0
        %618 = vmatprep.subr.mxu0 0.0
        %619 = vmatpush1.msra.mxu0 0.0
        %620 = vmatprep.subr.mxu0 0.0
        %621 = vmatpush1.msra.mxu0 0.0
        %622 = vmatprep.subr.mxu0 0.0
        %623 = vmatpush1.msra.mxu0 0.0
        %624 = vmatprep.mubr.f32.mxu0 0.0
        %625 = vmatmul.mubr.f32.gmra.mrb[0].mxu0 %v549
        %v626 = vpop.f32.mrb[0].mxu0
        %v627 = vadd.f32 %v530, %v626
        %v628 = vpop.f32.mrb[0].mxu0
        %v629 = vadd.f32 %v530, %v628
        %630 = vmatprep.mubr.f32.mxu0 0.0
        %631 = vmatmul.mubr.f32.gmra.mrb[0].mxu0 %v552
        %v632 = vpop.f32.mrb[0].mxu0
        %v633 = vadd.f32 %v535, %v632
        %v634 = vpop.f32.mrb[0].mxu0
        %v635 = vadd.f32 %v535, %v634
        %636 = vmatprep.mubr.f32.mxu0 0.0
        %637 = vmatmul.mubr.f32.gmra.mrb[0].mxu0 %v555
        %v638 = vpop.f32.mrb[0].mxu0
        %v639 = vadd.f32 %v540, %v638
        %v640 = vpop.f32.mrb[0].mxu0
        %v641 = vadd.f32 %v540, %v640
        %642 = vmatprep.mubr.f32.mxu0 0.0
        %643 = vmatmul.mubr.f32.gmra.mrb[0].mxu0 %v558
        %v644 = vpop.f32.mrb[0].mxu0
        %v645 = vadd.f32 %v545, %v644
        %v646 = vpop.f32.mrb[0].mxu0
        %v647 = vadd.f32 %v545, %v646
        %648 = vdwg.mxu0
        %649 = vmatprep.subr.mxu0 %v506
        %650 = vmatpush1.msra.mxu0 %v505
        %651 = vmatprep.subr.mxu0 %v510
        %652 = vmatpush1.msra.mxu0 %v509
        %653 = vmatprep.subr.mxu0 %v514
        %654 = vmatpush1.msra.mxu0 %v513
        %655 = vmatprep.subr.mxu0 %v518
        %656 = vmatpush1.msra.mxu0 %v517
        %657 = vmatprep.subr.mxu0 0.0
        %658 = vmatpush1.msra.mxu0 0.0
        %659 = vmatprep.subr.mxu0 0.0
        %660 = vmatpush1.msra.mxu0 0.0
        %661 = vmatprep.subr.mxu0 0.0
        %662 = vmatpush1.msra.mxu0 0.0
        %663 = vmatprep.subr.mxu0 0.0
        %664 = vmatpush1.msra.mxu0 0.0
        %665 = vmatprep.subr.mxu0 0.0
        %666 = vmatpush1.msra.mxu0 0.0
        %667 = vmatprep.subr.mxu0 0.0
        %668 = vmatpush1.msra.mxu0 0.0
        %669 = vmatprep.subr.mxu0 0.0
        %670 = vmatpush1.msra.mxu0 0.0
        %671 = vmatprep.subr.mxu0 0.0
        %672 = vmatpush1.msra.mxu0 0.0
        %673 = vmatprep.subr.mxu0 0.0
        %674 = vmatpush1.msra.mxu0 0.0
        %675 = vmatprep.subr.mxu0 0.0
        %676 = vmatpush1.msra.mxu0 0.0
        %677 = vmatprep.subr.mxu0 0.0
        %678 = vmatpush1.msra.mxu0 0.0
        %679 = vmatprep.subr.mxu0 0.0
        %680 = vmatpush1.msra.mxu0 0.0
        %681 = vmatprep.subr.mxu0 0.0
        %682 = vmatpush1.msra.mxu0 0.0
        %683 = vmatprep.subr.mxu0 0.0
        %684 = vmatpush1.msra.mxu0 0.0
        %685 = vmatprep.subr.mxu0 0.0
        %686 = vmatpush1.msra.mxu0 0.0
        %687 = vmatprep.subr.mxu0 0.0
        %688 = vmatpush1.msra.mxu0 0.0
        %689 = vmatprep.subr.mxu0 0.0
        %690 = vmatpush1.msra.mxu0 0.0
        %691 = vmatprep.subr.mxu0 0.0
        %692 = vmatpush1.msra.mxu0 0.0
        %693 = vmatprep.subr.mxu0 0.0
        %694 = vmatpush1.msra.mxu0 0.0
        %695 = vmatprep.subr.mxu0 0.0
        %696 = vmatpush1.msra.mxu0 0.0
        %697 = vmatprep.subr.mxu0 0.0
        %698 = vmatpush1.msra.mxu0 0.0
        %699 = vmatprep.subr.mxu0 0.0
        %700 = vmatpush1.msra.mxu0 0.0
        %701 = vmatprep.subr.mxu0 0.0
        %702 = vmatpush1.msra.mxu0 0.0
        %703 = vmatprep.subr.mxu0 0.0
        %704 = vmatpush1.msra.mxu0 0.0
        %705 = vmatprep.subr.mxu0 0.0
        %706 = vmatpush1.msra.mxu0 0.0
        %707 = vmatprep.subr.mxu0 0.0
        %708 = vmatpush1.msra.mxu0 0.0
        %709 = vmatprep.subr.mxu0 0.0
        %710 = vmatpush1.msra.mxu0 0.0
        %711 = vmatprep.subr.mxu0 0.0
        %712 = vmatpush1.msra.mxu0 0.0
        %713 = vmatprep.mubr.f32.mxu0 0.0
        %714 = vmatmul.mubr.f32.gmra.mrb[0].mxu0 %v549
        %v715 = vpop.f32.mrb[0].mxu0
        %v716 = vadd.f32 %v530, %v715
        %v717 = vpop.f32.mrb[0].mxu0
        %v718 = vadd.f32 %v530, %v717
        %719 = vmatprep.mubr.f32.mxu0 0.0
        %720 = vmatmul.mubr.f32.gmra.mrb[0].mxu0 %v552
        %v721 = vpop.f32.mrb[0].mxu0
        %v722 = vadd.f32 %v535, %v721
        %v723 = vpop.f32.mrb[0].mxu0
        %v724 = vadd.f32 %v535, %v723
        %725 = vmatprep.mubr.f32.mxu0 0.0
        %726 = vmatmul.mubr.f32.gmra.mrb[0].mxu0 %v555
        %v727 = vpop.f32.mrb[0].mxu0
        %v728 = vadd.f32 %v540, %v727
        %v729 = vpop.f32.mrb[0].mxu0
        %v730 = vadd.f32 %v540, %v729
        %731 = vmatprep.mubr.f32.mxu0 0.0
        %732 = vmatmul.mubr.f32.gmra.mrb[0].mxu0 %v558
        %v733 = vpop.f32.mrb[0].mxu0
        %v734 = vadd.f32 %v545, %v733
        %v735 = vpop.f32.mrb[0].mxu0
        %v736 = vadd.f32 %v545, %v735
        %737 = vdwg.mxu0
        %v738 = vmax.f32 %v627, 0.0
        %v739 = vmax.f32 %v629, 0.0
        %v740 = vmax.f32 %v716, 0.0
        %v741 = vmax.f32 %v718, 0.0
        %v742 = vmax.f32 %v633, 0.0
        %v743 = vmax.f32 %v635, 0.0
        %v744 = vmax.f32 %v722, 0.0
        %v745 = vmax.f32 %v724, 0.0
        %v746 = vmax.f32 %v639, 0.0
        %v747 = vmax.f32 %v641, 0.0
        %v748 = vmax.f32 %v728, 0.0
        %v749 = vmax.f32 %v730, 0.0
        %v750 = vmax.f32 %v645, 0.0
        %v751 = vmax.f32 %v647, 0.0
        %v752 = vmax.f32 %v734, 0.0
        %v753 = vmax.f32 %v736, 0.0
        %v754 = vld [vmem:[%s5] sm:$0xf]
        %v755 = vld [vmem:[%s6] sm:$0xf]
        %757 = vset.pattern.permute.xlu0 0
        %758 = vperm.xlu0 %757, %v755
        %v759 = vpop.permute.xlu0 %758
        %v762 = vsel %vm547, %v754, 0
        %764 = vmatprep.subr.mxu0 %v739
        %765 = vmatpush1.msra.mxu0 %v738
        %766 = vmatprep.subr.mxu0 %v743
        %767 = vmatpush1.msra.mxu0 %v742
        %768 = vmatprep.subr.mxu0 %v747
        %769 = vmatpush1.msra.mxu0 %v746
        %770 = vmatprep.subr.mxu0 %v751
        %771 = vmatpush1.msra.mxu0 %v750
        %772 = vmatprep.subr.mxu0 0.0
        %773 = vmatpush1.msra.mxu0 0.0
        %774 = vmatprep.subr.mxu0 0.0
        %775 = vmatpush1.msra.mxu0 0.0
        %776 = vmatprep.subr.mxu0 0.0
        %777 = vmatpush1.msra.mxu0 0.0
        %778 = vmatprep.subr.mxu0 0.0
        %779 = vmatpush1.msra.mxu0 0.0
        %780 = vmatprep.subr.mxu0 0.0
        %781 = vmatpush1.msra.mxu0 0.0
        %782 = vmatprep.subr.mxu0 0.0
        %783 = vmatpush1.msra.mxu0 0.0
        %784 = vmatprep.subr.mxu0 0.0
        %785 = vmatpush1.msra.mxu0 0.0
        %786 = vmatprep.subr.mxu0 0.0
        %787 = vmatpush1.msra.mxu0 0.0
        %788 = vmatprep.subr.mxu0 0.0
        %789 = vmatpush1.msra.mxu0 0.0
        %790 = vmatprep.subr.mxu0 0.0
        %791 = vmatpush1.msra.mxu0 0.0
        %792 = vmatprep.subr.mxu0 0.0
        %793 = vmatpush1.msra.mxu0 0.0
        %794 = vmatprep.subr.mxu0 0.0
        %795 = vmatpush1.msra.mxu0 0.0
        %796 = vmatprep.subr.mxu0 0.0
        %797 = vmatpush1.msra.mxu0 0.0
        %798 = vmatprep.subr.mxu0 0.0
        %799 = vmatpush1.msra.mxu0 0.0
        %800 = vmatprep.subr.mxu0 0.0
        %801 = vmatpush1.msra.mxu0 0.0
        %802 = vmatprep.subr.mxu0 0.0
        %803 = vmatpush1.msra.mxu0 0.0
        %804 = vmatprep.subr.mxu0 0.0
        %805 = vmatpush1.msra.mxu0 0.0
        %806 = vmatprep.subr.mxu0 0.0
        %807 = vmatpush1.msra.mxu0 0.0
        %808 = vmatprep.subr.mxu0 0.0
        %809 = vmatpush1.msra.mxu0 0.0
        %810 = vmatprep.subr.mxu0 0.0
        %811 = vmatpush1.msra.mxu0 0.0
        %812 = vmatprep.subr.mxu0 0.0
        %813 = vmatpush1.msra.mxu0 0.0
        %814 = vmatprep.subr.mxu0 0.0
        %815 = vmatpush1.msra.mxu0 0.0
        %816 = vmatprep.subr.mxu0 0.0
        %817 = vmatpush1.msra.mxu0 0.0
        %818 = vmatprep.subr.mxu0 0.0
        %819 = vmatpush1.msra.mxu0 0.0
        %820 = vmatprep.subr.mxu0 0.0
        %821 = vmatpush1.msra.mxu0 0.0
        %822 = vmatprep.subr.mxu0 0.0
        %823 = vmatpush1.msra.mxu0 0.0
        %824 = vmatprep.subr.mxu0 0.0
        %825 = vmatpush1.msra.mxu0 0.0
        %826 = vmatprep.subr.mxu0 0.0
        %827 = vmatpush1.msra.mxu0 0.0
        %828 = vmatprep.mubr.f32.mxu0 0.0
        %829 = vmatmul.mubr.f32.gmra.mrb[0].mxu0 %v762
        %v830 = vpop.f32.mrb[0].mxu0
        %v831 = vadd.f32 %v759, %v830
        %v832 = vpop.f32.mrb[0].mxu0
        %v833 = vadd.f32 %v759, %v832
        %834 = vdwg.mxu0
        %835 = vmatprep.subr.mxu0 %v741
        %836 = vmatpush1.msra.mxu0 %v740
        %837 = vmatprep.subr.mxu0 %v745
        %838 = vmatpush1.msra.mxu0 %v744
        %839 = vmatprep.subr.mxu0 %v749
        %840 = vmatpush1.msra.mxu0 %v748
        %841 = vmatprep.subr.mxu0 %v753
        %842 = vmatpush1.msra.mxu0 %v752
        %843 = vmatprep.subr.mxu0 0.0
        %844 = vmatpush1.msra.mxu0 0.0
        %845 = vmatprep.subr.mxu0 0.0
        %846 = vmatpush1.msra.mxu0 0.0
        %847 = vmatprep.subr.mxu0 0.0
        %848 = vmatpush1.msra.mxu0 0.0
        %849 = vmatprep.subr.mxu0 0.0
        %850 = vmatpush1.msra.mxu0 0.0
        %851 = vmatprep.subr.mxu0 0.0
        %852 = vmatpush1.msra.mxu0 0.0
        %853 = vmatprep.subr.mxu0 0.0
        %854 = vmatpush1.msra.mxu0 0.0
        %855 = vmatprep.subr.mxu0 0.0
        %856 = vmatpush1.msra.mxu0 0.0
        %857 = vmatprep.subr.mxu0 0.0
        %858 = vmatpush1.msra.mxu0 0.0
        %859 = vmatprep.subr.mxu0 0.0
        %860 = vmatpush1.msra.mxu0 0.0
        %861 = vmatprep.subr.mxu0 0.0
        %862 = vmatpush1.msra.mxu0 0.0
        %863 = vmatprep.subr.mxu0 0.0
        %864 = vmatpush1.msra.mxu0 0.0
        %865 = vmatprep.subr.mxu0 0.0
        %866 = vmatpush1.msra.mxu0 0.0
        %867 = vmatprep.subr.mxu0 0.0
        %868 = vmatpush1.msra.mxu0 0.0
        %869 = vmatprep.subr.mxu0 0.0
        %870 = vmatpush1.msra.mxu0 0.0
        %871 = vmatprep.subr.mxu0 0.0
        %872 = vmatpush1.msra.mxu0 0.0
        %873 = vmatprep.subr.mxu0 0.0
        %874 = vmatpush1.msra.mxu0 0.0
        %875 = vmatprep.subr.mxu0 0.0
        %876 = vmatpush1.msra.mxu0 0.0
        %877 = vmatprep.subr.mxu0 0.0
        %878 = vmatpush1.msra.mxu0 0.0
        %879 = vmatprep.subr.mxu0 0.0
        %880 = vmatpush1.msra.mxu0 0.0
        %881 = vmatprep.subr.mxu0 0.0
        %882 = vmatpush1.msra.mxu0 0.0
        %883 = vmatprep.subr.mxu0 0.0
        %884 = vmatpush1.msra.mxu0 0.0
        %885 = vmatprep.subr.mxu0 0.0
        %886 = vmatpush1.msra.mxu0 0.0
        %887 = vmatprep.subr.mxu0 0.0
        %888 = vmatpush1.msra.mxu0 0.0
        %889 = vmatprep.subr.mxu0 0.0
        %890 = vmatpush1.msra.mxu0 0.0
        %891 = vmatprep.subr.mxu0 0.0
        %892 = vmatpush1.msra.mxu0 0.0
        %893 = vmatprep.subr.mxu0 0.0
        %894 = vmatpush1.msra.mxu0 0.0
        %895 = vmatprep.subr.mxu0 0.0
        %896 = vmatpush1.msra.mxu0 0.0
        %897 = vmatprep.subr.mxu0 0.0
        %898 = vmatpush1.msra.mxu0 0.0
        %899 = vmatprep.mubr.f32.mxu0 0.0
        %900 = vmatmul.mubr.f32.gmra.mrb[0].mxu0 %v762
        %v901 = vpop.f32.mrb[0].mxu0
        %v902 = vadd.f32 %v759, %v901
        %v903 = vpop.f32.mrb[0].mxu0
        %v904 = vadd.f32 %v759, %v903
        %905 = vdwg.mxu0
        %v910 = vcombine.low %v831, %v833
        %v911 = vcombine.low %v902, %v904
        %914 = vst [vmem:[%s272] sm:$0xff] %v910
        %915 = vst [vmem:[%s272 + $0x8] sm:$0xff] %v911
        %s916 = sand.u32 %s181, 1
        %s917 = scalar_lea.sflag [#allocation3], %s916
        %s918 = sand.u32 %s181, 1
        %s919 = smul.addr %s918, 16
        %s920 = scalar_lea.vmem [#allocation2], %s919
        // Predicated region
        $region49: #{tpu_custom_call.1} parent=47 // pred_check
          %p921 = pneg %p191
        $region50: #{tpu_custom_call.1} parent=47 // pred_check_branch
          %923 = sbr.rel (%p921) target = $region52
        $region51: #{tpu_custom_call.1} parent=47 // pred_region
          %s924 = smul.u32 4, %s21
          %s926 = ssub.s32 256, 256
          %927 = vsyncadd %s917, %s926
          %s928 = smul.addr %s924, 64
          %s929 = scalar_lea.hbm %s7, %s928
          %s931 = sshll.u32 %s920, 4
          %s932 = int_to_ptr.vmem [resolvable:$true] %s931
          %934 = dma.vmem_to_hbm [thread:$0]  %s932, 256, %s929, %s917
        $region52: #{tpu_custom_call.1} parent=47 // pred_fallthru
          _
      $region48: #{tpu_custom_call.1} parent=5 // pred_fallthru
        _
      %p935 = scmp.le.s32.totalorder 2, %s16
      // Predicated region
      $region53: #{tpu_custom_call.1} parent=5 // pred_check
        %p936 = pneg %p935
      $region54: #{tpu_custom_call.1} parent=5 // pred_check_branch
        %938 = sbr.rel (%p936) target = $region56
      $region55: #{tpu_custom_call.1} parent=5 // pred_region
        %s939 = ssub.s32 %s16, 2
        // Predicated region
        $region57: #{tpu_custom_call.1} parent=55 // pred_check
          %p940 = pneg %p197
        $region58: #{tpu_custom_call.1} parent=55 // pred_check_branch
          %942 = sbr.rel (%p940) target = $region60
        $region59: #{tpu_custom_call.1} parent=55 // pred_region
          %s943 = sand.u32 %s182, 1
          %s944 = scalar_lea.sflag [#allocation3], %s943
          %s945 = sand.u32 %s182, 1
          %s946 = smul.addr %s945, 16
          %s947 = scalar_lea.vmem [#allocation2], %s946
          %948 = dma.done %s944, 256
        $region60: #{tpu_custom_call.1} parent=55 // pred_fallthru
          _
      $region56: #{tpu_custom_call.1} parent=5 // pred_fallthru
        _
    $region6: #{tpu_custom_call.1} parent=1 // loop_footer
      %s20 = sadd.s32 1, %s16
    $region7: #{tpu_custom_call.1} parent=1 // loop_footer_branch
      %15 = sbr.rel target = $region3
    $region8: #{tpu_custom_call.1} parent=1 // loop_exit
      _
    %949 = vsyncpa [#allocation3], 1
    %s950 = scalar_lea.sflag [#allocation3], 1
    %951 = vsyncpa %s950, 1

</llo_original>
